<compile_context>
chip_gen: v7x
topology: tpu7x:2x2x1
jax: 0.10.0
libtpu: 0.0.40
codegen_flags: <defaults>
</compile_context>

<pallas_src>
import jax
import jax.numpy as jnp
from jax import lax
from jax.experimental import pallas as pl
from jax.experimental.pallas import tpu as pltpu


def _labeled_matching_kernel(f_ref, lut_ref, o_ref):
    # f_ref:   (N, D)   full features block (resident across the grid)
    # lut_ref: (tp, D)  person-axis tile of the lookup table
    # o_ref:   (N, tp)  matching tile of the scores
    # Contract the feature axis of both operands (no explicit .T / XLU work);
    # accumulate in f32 on the MXU.
    o_ref[...] = lax.dot_general(
        f_ref[...],
        lut_ref[...],
        dimension_numbers=(((1,), (1,)), ((), ())),
        preferred_element_type=jnp.float32,
    )


def labeled_matching_forward(
    features,
    lookup_table,
    pid_labels=None,
    *,
    tp=None,
    compute_dtype=jnp.bfloat16,
    vmem_tile_budget_bytes=8 * 1024 * 1024,
):
    """scores = features @ lookup_table.T on TPU via Pallas.

    pid_labels is accepted for API parity with the PyTorch module but unused
    in forward (it only drives the in-place lookup-table momentum update in
    the custom backward).

    tp: person-axis tile size (must be a multiple of 128 when tiling).
        None -> auto: collapse to a single block when the LUT tile fits
        `vmem_tile_budget_bytes`, otherwise the largest 128-multiple tile
        fitting the budget.
    compute_dtype: dtype the operands are cast to before the matmul
        (accumulation stays f32). None keeps the input dtype (f32).
    """
    del pid_labels  # forward does not use the labels
    n, d = features.shape
    p, d2 = lookup_table.shape
    assert d == d2, "feature length mismatch"

    if compute_dtype is not None:
        features = features.astype(compute_dtype)
        lookup_table = lookup_table.astype(compute_dtype)

    itemsize = jnp.dtype(lookup_table.dtype).itemsize

    if tp is None:
        if p * d * itemsize <= vmem_tile_budget_bytes:
            tp = p  # whole table in one VMEM block -> single grid step
        else:
            tp = max(128, (vmem_tile_budget_bytes // (d * itemsize)) // 128 * 128)
    num_tiles = pl.cdiv(p, tp)  # ragged person counts allowed

    cost = pl.CostEstimate(
        flops=2 * n * d * p,
        transcendentals=0,
        bytes_accessed=(n * d + p * d) * itemsize + n * p * 4,
    )

    return pl.pallas_call(
        _labeled_matching_kernel,
        out_shape=jax.ShapeDtypeStruct((n, p), jnp.float32),
        grid_spec=pltpu.PrefetchScalarGridSpec(
            num_scalar_prefetch=0,
            grid=(num_tiles,),
            in_specs=[
                # features: same block every step -> stays resident in VMEM
                pl.BlockSpec((n, d), lambda j: (0, 0)),
                # lookup table: tile over the person axis (streamed)
                pl.BlockSpec((tp, d), lambda j: (j, 0)),
            ],
            out_specs=pl.BlockSpec((n, tp), lambda j: (0, j)),
        ),
        compiler_params=pltpu.CompilerParams(
            dimension_semantics=("parallel",),
        ),
        cost_estimate=cost,
    )(features, lookup_table)


if __name__ == "__main__":
    # Small shapes consistent with the module:
    #   num_persons = 512, feat_len = 256, N (num proposals) = 16
    num_persons = 512
    feat_len = 256
    n_proposals = 16

    key = jax.random.PRNGKey(0)
    k_feat, k_lut, k_lbl = jax.random.split(key, 3)

    features = jax.random.normal(k_feat, (n_proposals, feat_len), dtype=jnp.float32)

    # The PyTorch module registers the lookup table as a zeros buffer; a zero
    # table gives trivially-zero scores, so we deterministically fill it with
    # L2-normalized rows (the state it would be in after training updates).
    lookup_table = jax.random.normal(k_lut, (num_persons, feat_len), dtype=jnp.float32)
    lookup_table = lookup_table / jnp.linalg.norm(lookup_table, axis=1, keepdims=True)

    pid_labels = jax.random.randint(
        k_lbl, (n_proposals,), minval=-1, maxval=num_persons, dtype=jnp.int32
    )

    # TODO(synk): the momentum update of lookup_table lives in the custom
    # backward pass (training-time in-place buffer mutation); only forward is
    # implemented here.

    ref = features @ lookup_table.T

    # 1) Full-precision path, single collapsed grid step.
    scores_f32 = labeled_matching_forward(
        features, lookup_table, pid_labels, compute_dtype=None
    )
    scores_f32 = jax.block_until_ready(scores_f32)
    assert scores_f32.shape == (n_proposals, num_persons)
    assert jnp.allclose(scores_f32, ref, atol=1e-4, rtol=1e-4)

    # 2) Default bf16-operand path (f32 accumulation) — relaxed tolerance.
    scores_bf16 = labeled_matching_forward(features, lookup_table, pid_labels)
    scores_bf16 = jax.block_until_ready(scores_bf16)
    assert scores_bf16.shape == (n_proposals, num_persons)
    assert jnp.allclose(scores_bf16, ref, atol=5e-2, rtol=5e-2)

    # 3) Explicitly tiled person axis (exercises the multi-step streamed path
    #    used for large re-ID tables).
    scores_tiled = labeled_matching_forward(
        features, lookup_table, pid_labels, tp=128, compute_dtype=None
    )
    scores_tiled = jax.block_until_ready(scores_tiled)
    assert jnp.allclose(scores_tiled, ref, atol=1e-4, rtol=1e-4)

    # 4) Ragged person count (not a multiple of the 128 tile): the last output
    #    tile is partial and masked on writeback.
    p_ragged = 448  # 3.5 * 128
    lut_ragged = lookup_table[:p_ragged]
    ref_ragged = features @ lut_ragged.T
    scores_ragged = labeled_matching_forward(
        features, lut_ragged, pid_labels, tp=128, compute_dtype=None
    )
    scores_ragged = jax.block_until_ready(scores_ragged)
    assert scores_ragged.shape == (n_proposals, p_ragged)
    assert jnp.allclose(scores_ragged, ref_ragged, atol=1e-4, rtol=1e-4)

    print("KERNEL_OK")
</pallas_src>

<mosaic_0001>
module attributes {stable_mosaic.version = 11 : i64} {
  func.func @_labeled_matching_kernel(%arg0: i32, %arg1: memref<16x256xf32, #tpu.memory_space<vmem>>, %arg2: memref<512x256xf32, #tpu.memory_space<vmem>>, %arg3: memref<16x512xf32, #tpu.memory_space<vmem>>) attributes {dimension_semantics = [#tpu.dimension_semantics<parallel>], iteration_bounds = array<i64: 1>, scalar_prefetch = 0 : i64, scratch_operands = 0 : i64, tpu.core_type = #tpu.core_type<tc>, window_params = [{pipeline_mode = #tpu.pipeline_mode<synchronous>, transform_indices = @transform_0, window_bounds = array<i64: 16, 256>}, {transform_indices = @transform_1, window_bounds = array<i64: 512, 256>}, {transform_indices = @transform_2, window_bounds = array<i64: 16, 512>}]} {
    %c0 = arith.constant 0 : index
    %c0_0 = arith.constant 0 : index
    %0 = vector.load %arg1[%c0, %c0_0] : memref<16x256xf32, #tpu.memory_space<vmem>>, vector<16x256xf32>
    %c0_1 = arith.constant 0 : index
    %c0_2 = arith.constant 0 : index
    %1 = vector.load %arg2[%c0_1, %c0_2] : memref<512x256xf32, #tpu.memory_space<vmem>>, vector<512x256xf32>
    %cst = arith.constant dense<0.000000e+00> : vector<16x512xf32>
    %2 = tpu.matmul %0, %1, %cst {dimension_numbers = #tpu.dot_dimension_numbers<[1], [1], [0], [0], [0, 0, 1, 0], [], []>} : vector<16x256xf32>, vector<512x256xf32>, vector<16x512xf32> -> vector<16x512xf32>
    %c0_3 = arith.constant 0 : index
    %c0_4 = arith.constant 0 : index
    %3 = vector.load %arg3[%c0_3, %c0_4] : memref<16x512xf32, #tpu.memory_space<vmem>>, vector<16x512xf32>
    tpu.vector_store %arg3[%c0_3, %c0_4], %2 {strides = array<i32>} : memref<16x512xf32, #tpu.memory_space<vmem>>, vector<16x512xf32>,
    return
  }
  func.func @transform_0(%arg0: i32) -> (i32, i32) {
    %c0_i32 = arith.constant 0 : i32
    %c0_i32_0 = arith.constant 0 : i32
    %c0_i32_1 = arith.constant 0 : i32
    return %c0_i32, %c0_i32_0 : i32, i32
  }
  func.func @transform_1(%arg0: i32) -> (i32, i32) {
    %c0_i32 = arith.constant 0 : i32
    %c0_i32_0 = arith.constant 0 : i32
    return %arg0, %c0_i32 : i32, i32
  }
  func.func @transform_2(%arg0: i32) -> (i32, i32) {
    %c0_i32 = arith.constant 0 : i32
    %c0_i32_0 = arith.constant 0 : i32
    return %c0_i32, %arg0 : i32, i32
  }
}

</mosaic_0001>

<llo_original>
// kernel: tpu_custom_call.1
$region0: #{tpu_custom_call.1}
  #allocation0 [shape = 'u32[]', space=smem, size = 0x4, offset = 0x4, fixed_abs, tag = 'smem constant byte address 0x4 - core index']
  #allocation1 [shape = 'u32[144,128]{1,0:T(1,128)}', space=vmem, size = 0x12000, scoped, tag = 'internal scratch']
  %s0 = inlined_call_operand.hbm [shape: f32[16,256], index: 0, kind: input, shape index: {}]
  %s1 = inlined_call_operand.hbm [shape: f32[512,256], index: 1, kind: input, shape index: {}]
  %s2 = inlined_call_operand.hbm [shape: f32[16,512], index: 2, kind: output, shape index: {}]
  %s3 = sld [smem:[#allocation0]]
  $region26: #{tpu_custom_call.1} parent=0
    _
  %s5 = ssub.s32 1, %s3
  %s6 = scalar_select 0, %s5, %s3
  $region1: #{tpu_custom_call.1} parent=0
    #allocation2 [shape = 'u8[16384]{0}', space=vmem, size = 0x4000, scoped, tag = 'input window, operand 0, single buffered']
    #allocation3 [shape = 's32[1]{0}', space=sflag, size = 0x4, scoped, tag = 'scoped memory for tpu_custom_call.1']
    #allocation4 [shape = 's32[1]{0}', space=sflag, size = 0x4, scoped, tag = 'scoped memory for tpu_custom_call.1']
    #allocation5 [shape = 'u8[524288]{0}', space=vmem, size = 0x80000, scoped, tag = 'input window, operand 1, single buffered']
    #allocation6 [shape = 's32[1]{0}', space=sflag, size = 0x4, scoped, tag = 'scoped memory for tpu_custom_call.1']
    #allocation7 [shape = 'u8[32768]{0}', space=vmem, size = 0x8000, scoped, tag = 'output window, operand 0, single buffered']
    %7 = vsyncpa [#allocation3], 0
    %8 = vsyncpa [#allocation6], 0
    %9 = vsyncpa [#allocation4], 0
    // Predicated region
    $region2: #{tpu_custom_call.1} parent=1 // pred_check
      _
    $region3: #{tpu_custom_call.1} parent=1 // pred_check_branch
      %11 = sbr.rel (0) target = $region5
    $region4: #{tpu_custom_call.1} parent=1 // pred_region
      %s13 = ssub.s32 512, 512
      %14 = vsyncadd [#allocation3], %s13
      %s15 = sshll.u32 [#allocation2], 4
      %s16 = int_to_ptr.vmem [resolvable:$true] %s15
      %21 = dma.hbm_to_vmem [thread:$0]  %s0, 512, %s16, [#allocation3], 256, 256, 16
    $region5: #{tpu_custom_call.1} parent=1 // pred_fallthru
      _
    // Predicated region
    $region6: #{tpu_custom_call.1} parent=1 // pred_check
      _
    $region7: #{tpu_custom_call.1} parent=1 // pred_check_branch
      %23 = sbr.rel (0) target = $region9
    $region8: #{tpu_custom_call.1} parent=1 // pred_region
      %s25 = ssub.s32 16384, 16384
      %26 = vsyncadd [#allocation6], %s25
      %s27 = sshll.u32 [#allocation5], 4
      %s28 = int_to_ptr.vmem [resolvable:$true] %s27
      %33 = dma.hbm_to_vmem [thread:$0]  %s1, 16384, %s28, [#allocation6], 256, 256, 16
    $region9: #{tpu_custom_call.1} parent=1 // pred_fallthru
      _
    // Predicated region
    $region10: #{tpu_custom_call.1} parent=1 // pred_check
      _
    $region11: #{tpu_custom_call.1} parent=1 // pred_check_branch
      %35 = sbr.rel (0) target = $region13
    $region12: #{tpu_custom_call.1} parent=1 // pred_region
      %36 = dma.done [#allocation3], 512
    $region13: #{tpu_custom_call.1} parent=1 // pred_fallthru
      _
    // Predicated region
    $region14: #{tpu_custom_call.1} parent=1 // pred_check
      _
    $region15: #{tpu_custom_call.1} parent=1 // pred_check_branch
      %38 = sbr.rel (0) target = $region17
    $region16: #{tpu_custom_call.1} parent=1 // pred_region
      %39 = dma.done [#allocation6], 16384
    $region17: #{tpu_custom_call.1} parent=1 // pred_fallthru
      _
    %v40 = vld [vmem:[#allocation2] sm:$0xff]
    %v41 = vld [vmem:[#allocation2 + $0x8] sm:$0xff]
    %v42 = vld [vmem:[#allocation2 + $0x10] sm:$0xff]
    %v43 = vld [vmem:[#allocation2 + $0x18] sm:$0xff]
    %v44 = vld [vmem:[#allocation5] sm:$0xff]
    %v45 = vld [vmem:[#allocation5 + $0x8] sm:$0xff]
    %v46 = vld [vmem:[#allocation5 + $0x10] sm:$0xff]
    %v47 = vld [vmem:[#allocation5 + $0x18] sm:$0xff]
    %v48 = vld [vmem:[#allocation5 + $0x20] sm:$0xff]
    %v49 = vld [vmem:[#allocation5 + $0x28] sm:$0xff]
    %v50 = vld [vmem:[#allocation5 + $0x30] sm:$0xff]
    %v51 = vld [vmem:[#allocation5 + $0x38] sm:$0xff]
    %v52 = vld [vmem:[#allocation5 + $0x40] sm:$0xff]
    %v53 = vld [vmem:[#allocation5 + $0x48] sm:$0xff]
    %v54 = vld [vmem:[#allocation5 + $0x50] sm:$0xff]
    %v55 = vld [vmem:[#allocation5 + $0x58] sm:$0xff]
    %v56 = vld [vmem:[#allocation5 + $0x60] sm:$0xff]
    %v57 = vld [vmem:[#allocation5 + $0x68] sm:$0xff]
    %v58 = vld [vmem:[#allocation5 + $0x70] sm:$0xff]
    %v59 = vld [vmem:[#allocation5 + $0x78] sm:$0xff]
    %v60 = vld [vmem:[#allocation5 + $0x80] sm:$0xff]
    %v61 = vld [vmem:[#allocation5 + $0x88] sm:$0xff]
    %v62 = vld [vmem:[#allocation5 + $0x90] sm:$0xff]
    %v63 = vld [vmem:[#allocation5 + $0x98] sm:$0xff]
    %v64 = vld [vmem:[#allocation5 + $0xa0] sm:$0xff]
    %v65 = vld [vmem:[#allocation5 + $0xa8] sm:$0xff]
    %v66 = vld [vmem:[#allocation5 + $0xb0] sm:$0xff]
    %v67 = vld [vmem:[#allocation5 + $0xb8] sm:$0xff]
    %v68 = vld [vmem:[#allocation5 + $0xc0] sm:$0xff]
    %v69 = vld [vmem:[#allocation5 + $0xc8] sm:$0xff]
    %v70 = vld [vmem:[#allocation5 + $0xd0] sm:$0xff]
    %v71 = vld [vmem:[#allocation5 + $0xd8] sm:$0xff]
    %v72 = vld [vmem:[#allocation5 + $0xe0] sm:$0xff]
    %v73 = vld [vmem:[#allocation5 + $0xe8] sm:$0xff]
    %v74 = vld [vmem:[#allocation5 + $0xf0] sm:$0xff]
    %v75 = vld [vmem:[#allocation5 + $0xf8] sm:$0xff]
    %v76 = vld [vmem:[#allocation5 + $0x100] sm:$0xff]
    %v77 = vld [vmem:[#allocation5 + $0x108] sm:$0xff]
    %v78 = vld [vmem:[#allocation5 + $0x110] sm:$0xff]
    %v79 = vld [vmem:[#allocation5 + $0x118] sm:$0xff]
    %v80 = vld [vmem:[#allocation5 + $0x120] sm:$0xff]
    %v81 = vld [vmem:[#allocation5 + $0x128] sm:$0xff]
    %v82 = vld [vmem:[#allocation5 + $0x130] sm:$0xff]
    %v83 = vld [vmem:[#allocation5 + $0x138] sm:$0xff]
    %v84 = vld [vmem:[#allocation5 + $0x140] sm:$0xff]
    %v85 = vld [vmem:[#allocation5 + $0x148] sm:$0xff]
    %v86 = vld [vmem:[#allocation5 + $0x150] sm:$0xff]
    %v87 = vld [vmem:[#allocation5 + $0x158] sm:$0xff]
    %v88 = vld [vmem:[#allocation5 + $0x160] sm:$0xff]
    %v89 = vld [vmem:[#allocation5 + $0x168] sm:$0xff]
    %v90 = vld [vmem:[#allocation5 + $0x170] sm:$0xff]
    %v91 = vld [vmem:[#allocation5 + $0x178] sm:$0xff]
    %v92 = vld [vmem:[#allocation5 + $0x180] sm:$0xff]
    %v93 = vld [vmem:[#allocation5 + $0x188] sm:$0xff]
    %v94 = vld [vmem:[#allocation5 + $0x190] sm:$0xff]
    %v95 = vld [vmem:[#allocation5 + $0x198] sm:$0xff]
    %v96 = vld [vmem:[#allocation5 + $0x1a0] sm:$0xff]
    %v97 = vld [vmem:[#allocation5 + $0x1a8] sm:$0xff]
    %v98 = vld [vmem:[#allocation5 + $0x1b0] sm:$0xff]
    %v99 = vld [vmem:[#allocation5 + $0x1b8] sm:$0xff]
    %v100 = vld [vmem:[#allocation5 + $0x1c0] sm:$0xff]
    %v101 = vld [vmem:[#allocation5 + $0x1c8] sm:$0xff]
    %v102 = vld [vmem:[#allocation5 + $0x1d0] sm:$0xff]
    %v103 = vld [vmem:[#allocation5 + $0x1d8] sm:$0xff]
    %v104 = vld [vmem:[#allocation5 + $0x1e0] sm:$0xff]
    %v105 = vld [vmem:[#allocation5 + $0x1e8] sm:$0xff]
    %v106 = vld [vmem:[#allocation5 + $0x1f0] sm:$0xff]
    %v107 = vld [vmem:[#allocation5 + $0x1f8] sm:$0xff]
    %v108 = vld [vmem:[#allocation5 + $0x200] sm:$0xff]
    %v109 = vld [vmem:[#allocation5 + $0x208] sm:$0xff]
    %v110 = vld [vmem:[#allocation5 + $0x210] sm:$0xff]
    %v111 = vld [vmem:[#allocation5 + $0x218] sm:$0xff]
    %v112 = vld [vmem:[#allocation5 + $0x220] sm:$0xff]
    %v113 = vld [vmem:[#allocation5 + $0x228] sm:$0xff]
    %v114 = vld [vmem:[#allocation5 + $0x230] sm:$0xff]
    %v115 = vld [vmem:[#allocation5 + $0x238] sm:$0xff]
    %v116 = vld [vmem:[#allocation5 + $0x240] sm:$0xff]
    %v117 = vld [vmem:[#allocation5 + $0x248] sm:$0xff]
    %v118 = vld [vmem:[#allocation5 + $0x250] sm:$0xff]
    %v119 = vld [vmem:[#allocation5 + $0x258] sm:$0xff]
    %v120 = vld [vmem:[#allocation5 + $0x260] sm:$0xff]
    %v121 = vld [vmem:[#allocation5 + $0x268] sm:$0xff]
    %v122 = vld [vmem:[#allocation5 + $0x270] sm:$0xff]
    %v123 = vld [vmem:[#allocation5 + $0x278] sm:$0xff]
    %v124 = vld [vmem:[#allocation5 + $0x280] sm:$0xff]
    %v125 = vld [vmem:[#allocation5 + $0x288] sm:$0xff]
    %v126 = vld [vmem:[#allocation5 + $0x290] sm:$0xff]
    %v127 = vld [vmem:[#allocation5 + $0x298] sm:$0xff]
    %v128 = vld [vmem:[#allocation5 + $0x2a0] sm:$0xff]
    %v129 = vld [vmem:[#allocation5 + $0x2a8] sm:$0xff]
    %v130 = vld [vmem:[#allocation5 + $0x2b0] sm:$0xff]
    %v131 = vld [vmem:[#allocation5 + $0x2b8] sm:$0xff]
    %v132 = vld [vmem:[#allocation5 + $0x2c0] sm:$0xff]
    %v133 = vld [vmem:[#allocation5 + $0x2c8] sm:$0xff]
    %v134 = vld [vmem:[#allocation5 + $0x2d0] sm:$0xff]
    %v135 = vld [vmem:[#allocation5 + $0x2d8] sm:$0xff]
    %v136 = vld [vmem:[#allocation5 + $0x2e0] sm:$0xff]
    %v137 = vld [vmem:[#allocation5 + $0x2e8] sm:$0xff]
    %v138 = vld [vmem:[#allocation5 + $0x2f0] sm:$0xff]
    %v139 = vld [vmem:[#allocation5 + $0x2f8] sm:$0xff]
    %v140 = vld [vmem:[#allocation5 + $0x300] sm:$0xff]
    %v141 = vld [vmem:[#allocation5 + $0x308] sm:$0xff]
    %v142 = vld [vmem:[#allocation5 + $0x310] sm:$0xff]
    %v143 = vld [vmem:[#allocation5 + $0x318] sm:$0xff]
    %v144 = vld [vmem:[#allocation5 + $0x320] sm:$0xff]
    %v145 = vld [vmem:[#allocation5 + $0x328] sm:$0xff]
    %v146 = vld [vmem:[#allocation5 + $0x330] sm:$0xff]
    %v147 = vld [vmem:[#allocation5 + $0x338] sm:$0xff]
    %v148 = vld [vmem:[#allocation5 + $0x340] sm:$0xff]
    %v149 = vld [vmem:[#allocation5 + $0x348] sm:$0xff]
    %v150 = vld [vmem:[#allocation5 + $0x350] sm:$0xff]
    %v151 = vld [vmem:[#allocation5 + $0x358] sm:$0xff]
    %v152 = vld [vmem:[#allocation5 + $0x360] sm:$0xff]
    %v153 = vld [vmem:[#allocation5 + $0x368] sm:$0xff]
    %v154 = vld [vmem:[#allocation5 + $0x370] sm:$0xff]
    %v155 = vld [vmem:[#allocation5 + $0x378] sm:$0xff]
    %v156 = vld [vmem:[#allocation5 + $0x380] sm:$0xff]
    %v157 = vld [vmem:[#allocation5 + $0x388] sm:$0xff]
    %v158 = vld [vmem:[#allocation5 + $0x390] sm:$0xff]
    %v159 = vld [vmem:[#allocation5 + $0x398] sm:$0xff]
    %v160 = vld [vmem:[#allocation5 + $0x3a0] sm:$0xff]
    %v161 = vld [vmem:[#allocation5 + $0x3a8] sm:$0xff]
    %v162 = vld [vmem:[#allocation5 + $0x3b0] sm:$0xff]
    %v163 = vld [vmem:[#allocation5 + $0x3b8] sm:$0xff]
    %v164 = vld [vmem:[#allocation5 + $0x3c0] sm:$0xff]
    %v165 = vld [vmem:[#allocation5 + $0x3c8] sm:$0xff]
    %v166 = vld [vmem:[#allocation5 + $0x3d0] sm:$0xff]
    %v167 = vld [vmem:[#allocation5 + $0x3d8] sm:$0xff]
    %v168 = vld [vmem:[#allocation5 + $0x3e0] sm:$0xff]
    %v169 = vld [vmem:[#allocation5 + $0x3e8] sm:$0xff]
    %v170 = vld [vmem:[#allocation5 + $0x3f0] sm:$0xff]
    %v171 = vld [vmem:[#allocation5 + $0x3f8] sm:$0xff]
    %172 = vmatprep.subr.mxu0 %v45
    %173 = vmatpush1.xpose.msra.mxu0 %v44
    %174 = vmatprep.subr.mxu0 %v47
    %175 = vmatpush1.xpose.msra.mxu0 %v46
    %176 = vmatprep.subr.mxu0 %v49
    %177 = vmatpush1.xpose.msra.mxu0 %v48
    %178 = vmatprep.subr.mxu0 %v51
    %179 = vmatpush1.xpose.msra.mxu0 %v50
    %180 = vmatprep.subr.mxu0 %v53
    %181 = vmatpush1.xpose.msra.mxu0 %v52
    %182 = vmatprep.subr.mxu0 %v55
    %183 = vmatpush1.xpose.msra.mxu0 %v54
    %184 = vmatprep.subr.mxu0 %v57
    %185 = vmatpush1.xpose.msra.mxu0 %v56
    %186 = vmatprep.subr.mxu0 %v59
    %187 = vmatpush1.xpose.msra.mxu0 %v58
    %188 = vmatprep.subr.mxu0 %v61
    %189 = vmatpush1.xpose.msra.mxu0 %v60
    %190 = vmatprep.subr.mxu0 %v63
    %191 = vmatpush1.xpose.msra.mxu0 %v62
    %192 = vmatprep.subr.mxu0 %v65
    %193 = vmatpush1.xpose.msra.mxu0 %v64
    %194 = vmatprep.subr.mxu0 %v67
    %195 = vmatpush1.xpose.msra.mxu0 %v66
    %196 = vmatprep.subr.mxu0 %v69
    %197 = vmatpush1.xpose.msra.mxu0 %v68
    %198 = vmatprep.subr.mxu0 %v71
    %199 = vmatpush1.xpose.msra.mxu0 %v70
    %200 = vmatprep.subr.mxu0 %v73
    %201 = vmatpush1.xpose.msra.mxu0 %v72
    %202 = vmatprep.subr.mxu0 %v75
    %203 = vmatpush1.xpose.msra.mxu0 %v74
    %204 = vmatprep.subr.mxu0 %v77
    %205 = vmatpush1.xpose.msra.mxu0 %v76
    %206 = vmatprep.subr.mxu0 %v79
    %207 = vmatpush1.xpose.msra.mxu0 %v78
    %208 = vmatprep.subr.mxu0 %v81
    %209 = vmatpush1.xpose.msra.mxu0 %v80
    %210 = vmatprep.subr.mxu0 %v83
    %211 = vmatpush1.xpose.msra.mxu0 %v82
    %212 = vmatprep.subr.mxu0 %v85
    %213 = vmatpush1.xpose.msra.mxu0 %v84
    %214 = vmatprep.subr.mxu0 %v87
    %215 = vmatpush1.xpose.msra.mxu0 %v86
    %216 = vmatprep.subr.mxu0 %v89
    %217 = vmatpush1.xpose.msra.mxu0 %v88
    %218 = vmatprep.subr.mxu0 %v91
    %219 = vmatpush1.xpose.msra.mxu0 %v90
    %220 = vmatprep.subr.mxu0 %v93
    %221 = vmatpush1.xpose.msra.mxu0 %v92
    %222 = vmatprep.subr.mxu0 %v95
    %223 = vmatpush1.xpose.msra.mxu0 %v94
    %224 = vmatprep.subr.mxu0 %v97
    %225 = vmatpush1.xpose.msra.mxu0 %v96
    %226 = vmatprep.subr.mxu0 %v99
    %227 = vmatpush1.xpose.msra.mxu0 %v98
    %228 = vmatprep.subr.mxu0 %v101
    %229 = vmatpush1.xpose.msra.mxu0 %v100
    %230 = vmatprep.subr.mxu0 %v103
    %231 = vmatpush1.xpose.msra.mxu0 %v102
    %232 = vmatprep.subr.mxu0 %v105
    %233 = vmatpush1.xpose.msra.mxu0 %v104
    %234 = vmatprep.subr.mxu0 %v107
    %235 = vmatpush1.xpose.msra.mxu0 %v106
    %236 = vmatprep.mubr.f32.mxu0 %v41
    %237 = vmatmul.mubr.f32.gmra.mrb[0].mxu0 %v40
    %v238 = vpop.f32.mrb[0].mxu0
    %v239 = vadd.f32 0.0, %v238
    %v240 = vpop.f32.mrb[0].mxu0
    %v241 = vadd.f32 0.0, %v240
    %242 = vmatprep.mubr.f32.mxu0 %v43
    %243 = vmatmul.mubr.f32.gmra.mrb[0].mxu0 %v42
    %v244 = vpop.f32.mrb[0].mxu0
    %v245 = vadd.f32 0.0, %v244
    %v246 = vpop.f32.mrb[0].mxu0
    %v247 = vadd.f32 0.0, %v246
    %248 = vdwg.mxu0
    %249 = vmatprep.subr.mxu0 %v109
    %250 = vmatpush1.xpose.msra.mxu0 %v108
    %251 = vmatprep.subr.mxu0 %v111
    %252 = vmatpush1.xpose.msra.mxu0 %v110
    %253 = vmatprep.subr.mxu0 %v113
    %254 = vmatpush1.xpose.msra.mxu0 %v112
    %255 = vmatprep.subr.mxu0 %v115
    %256 = vmatpush1.xpose.msra.mxu0 %v114
    %257 = vmatprep.subr.mxu0 %v117
    %258 = vmatpush1.xpose.msra.mxu0 %v116
    %259 = vmatprep.subr.mxu0 %v119
    %260 = vmatpush1.xpose.msra.mxu0 %v118
    %261 = vmatprep.subr.mxu0 %v121
    %262 = vmatpush1.xpose.msra.mxu0 %v120
    %263 = vmatprep.subr.mxu0 %v123
    %264 = vmatpush1.xpose.msra.mxu0 %v122
    %265 = vmatprep.subr.mxu0 %v125
    %266 = vmatpush1.xpose.msra.mxu0 %v124
    %267 = vmatprep.subr.mxu0 %v127
    %268 = vmatpush1.xpose.msra.mxu0 %v126
    %269 = vmatprep.subr.mxu0 %v129
    %270 = vmatpush1.xpose.msra.mxu0 %v128
    %271 = vmatprep.subr.mxu0 %v131
    %272 = vmatpush1.xpose.msra.mxu0 %v130
    %273 = vmatprep.subr.mxu0 %v133
    %274 = vmatpush1.xpose.msra.mxu0 %v132
    %275 = vmatprep.subr.mxu0 %v135
    %276 = vmatpush1.xpose.msra.mxu0 %v134
    %277 = vmatprep.subr.mxu0 %v137
    %278 = vmatpush1.xpose.msra.mxu0 %v136
    %279 = vmatprep.subr.mxu0 %v139
    %280 = vmatpush1.xpose.msra.mxu0 %v138
    %281 = vmatprep.subr.mxu0 %v141
    %282 = vmatpush1.xpose.msra.mxu0 %v140
    %283 = vmatprep.subr.mxu0 %v143
    %284 = vmatpush1.xpose.msra.mxu0 %v142
    %285 = vmatprep.subr.mxu0 %v145
    %286 = vmatpush1.xpose.msra.mxu0 %v144
    %287 = vmatprep.subr.mxu0 %v147
    %288 = vmatpush1.xpose.msra.mxu0 %v146
    %289 = vmatprep.subr.mxu0 %v149
    %290 = vmatpush1.xpose.msra.mxu0 %v148
    %291 = vmatprep.subr.mxu0 %v151
    %292 = vmatpush1.xpose.msra.mxu0 %v150
    %293 = vmatprep.subr.mxu0 %v153
    %294 = vmatpush1.xpose.msra.mxu0 %v152
    %295 = vmatprep.subr.mxu0 %v155
    %296 = vmatpush1.xpose.msra.mxu0 %v154
    %297 = vmatprep.subr.mxu0 %v157
    %298 = vmatpush1.xpose.msra.mxu0 %v156
    %299 = vmatprep.subr.mxu0 %v159
    %300 = vmatpush1.xpose.msra.mxu0 %v158
    %301 = vmatprep.subr.mxu0 %v161
    %302 = vmatpush1.xpose.msra.mxu0 %v160
    %303 = vmatprep.subr.mxu0 %v163
    %304 = vmatpush1.xpose.msra.mxu0 %v162
    %305 = vmatprep.subr.mxu0 %v165
    %306 = vmatpush1.xpose.msra.mxu0 %v164
    %307 = vmatprep.subr.mxu0 %v167
    %308 = vmatpush1.xpose.msra.mxu0 %v166
    %309 = vmatprep.subr.mxu0 %v169
    %310 = vmatpush1.xpose.msra.mxu0 %v168
    %311 = vmatprep.subr.mxu0 %v171
    %312 = vmatpush1.xpose.msra.mxu0 %v170
    %313 = vmatprep.mubr.f32.mxu0 %v41
    %314 = vmatmul.mubr.f32.gmra.mrb[0].mxu0 %v40
    %v315 = vpop.f32.mrb[0].mxu0
    %v316 = vadd.f32 0.0, %v315
    %v317 = vpop.f32.mrb[0].mxu0
    %v318 = vadd.f32 0.0, %v317
    %319 = vmatprep.mubr.f32.mxu0 %v43
    %320 = vmatmul.mubr.f32.gmra.mrb[0].mxu0 %v42
    %v321 = vpop.f32.mrb[0].mxu0
    %v322 = vadd.f32 0.0, %v321
    %v323 = vpop.f32.mrb[0].mxu0
    %v324 = vadd.f32 0.0, %v323
    %325 = vdwg.mxu0
    %326 = vst [vmem:[#allocation7] sm:$0xff] %v239
    %327 = vst [vmem:[#allocation7 + $0x8] sm:$0xff] %v241
    %328 = vst [vmem:[#allocation7 + $0x10] sm:$0xff] %v316
    %329 = vst [vmem:[#allocation7 + $0x18] sm:$0xff] %v318
    %330 = vst [vmem:[#allocation7 + $0x20] sm:$0xff] %v245
    %331 = vst [vmem:[#allocation7 + $0x28] sm:$0xff] %v247
    %332 = vst [vmem:[#allocation7 + $0x30] sm:$0xff] %v322
    %333 = vst [vmem:[#allocation7 + $0x38] sm:$0xff] %v324
    // Predicated region
    $region18: #{tpu_custom_call.1} parent=1 // pred_check
      _
    $region19: #{tpu_custom_call.1} parent=1 // pred_check_branch
      %335 = sbr.rel (0) target = $region21
    $region20: #{tpu_custom_call.1} parent=1 // pred_region
      %s337 = ssub.s32 1024, 1024
      %338 = vsyncadd [#allocation4], %s337
      %s339 = sshll.u32 [#allocation7], 4
      %s340 = int_to_ptr.vmem [resolvable:$true] %s339
      %345 = dma.vmem_to_hbm [thread:$0]  %s340, 1024, %s2, [#allocation4], 512, 512, 32
    $region21: #{tpu_custom_call.1} parent=1 // pred_fallthru
      _
    // Predicated region
    $region22: #{tpu_custom_call.1} parent=1 // pred_check
      _
    $region23: #{tpu_custom_call.1} parent=1 // pred_check_branch
      %347 = sbr.rel (0) target = $region25
    $region24: #{tpu_custom_call.1} parent=1 // pred_region
      %348 = dma.done [#allocation4], 1024
    $region25: #{tpu_custom_call.1} parent=1 // pred_fallthru
      _
    %349 = vsyncpa [#allocation3], 1
    %350 = vsyncpa [#allocation6], 1
    %351 = vsyncpa [#allocation4], 1

</llo_original>
